<compile_context>
chip_gen: v7x
topology: tpu7x:2x2x1
jax: 0.10.0
libtpu: 0.0.40
codegen_flags: <defaults>
</compile_context>

<pallas_src>
import jax
import jax.numpy as jnp
from jax.experimental import pallas as pl
from jax.experimental.pallas import tpu as pltpu

IN_DIM = 1
OUT_DIM = 1

_LANES = 128            # lane-dense last dim (full, unmasked vld/vst)
_MAX_BLOCK_ROWS = 8192  # 8192 * 128 * 4 B = 4 MiB per f32 tile
_MIN_GRID_STEPS = 4     # >= 2x TensorCores (v7x has 2 TC/chip)


def _round_up(n, m):
    return ((n + m - 1) // m) * m


def _fma_kernel(p_ref, x_ref, o_ref):
    # p_ref: (2,) f32 in SMEM -> [w, b].  x_ref / o_ref: (block_rows, 128) VMEM tiles.
    w = p_ref[0]
    b = p_ref[1]
    o_ref[...] = (x_ref[...] * w + b).astype(o_ref.dtype)


def classical_lr_forward(x, w, b, *, xla_fallback_below=16384):
    """y = x @ W.T + b with in_dim = out_dim = 1.

    x: (B, 1); w: (1, 1) in PyTorch (out_dim, in_dim) layout; b: (1,).
    """
    B, din = x.shape
    assert din == IN_DIM
    assert w.shape == (OUT_DIM, IN_DIM)
    assert b.shape == (OUT_DIM,)

    w_s = w.reshape(()).astype(jnp.float32)
    b_s = b.reshape(()).astype(jnp.float32)

    n_main = (B // _LANES) * _LANES  # lane-aligned prefix handled by the kernel

    # Small batches (or nothing lane-aligned): fused XLA FMA is already at
    # roofline with zero plumbing; skip the pallas dispatch entirely.
    if B < xla_fallback_below or n_main == 0:
        return (x.astype(jnp.float32) * w_s + b_s).astype(x.dtype)

    rows = n_main // _LANES
    # Aim for >= _MIN_GRID_STEPS grid steps (pipelining + megacore sharding)
    # while capping the tile at 4 MiB (v7x-safe double-buffered footprint).
    block_rows = min(_MAX_BLOCK_ROWS,
                     max(8, _round_up(pl.cdiv(rows, _MIN_GRID_STEPS), 8)))
    grid = (pl.cdiv(rows, block_rows),)  # last block may be partial -> masked

    params = jnp.stack([w_s, b_s])  # single (2,) SMEM scalar input

    x_flat = x.reshape(-1)
    if n_main == B:
        x_main = x_flat                 # zero-copy: reshape is a bitcast
    else:
        x_main = jax.lax.slice(x_flat, (0,), (n_main,))
    x2d = x_main.reshape(rows, _LANES)  # lane-dense slab, no padding

    elem_bytes = x.dtype.itemsize
    y2d = pl.pallas_call(
        _fma_kernel,
        out_shape=jax.ShapeDtypeStruct((rows, _LANES), x.dtype),
        grid=grid,
        in_specs=[
            pl.BlockSpec(memory_space=pltpu.MemorySpace.SMEM),     # [w, b]
            pl.BlockSpec((block_rows, _LANES), lambda i: (i, 0)),  # x tile
        ],
        out_specs=pl.BlockSpec((block_rows, _LANES), lambda i: (i, 0)),
        compiler_params=pltpu.CompilerParams(
            dimension_semantics=("parallel",),   # shard grid across TCs (v7x)
            vmem_limit_bytes=48 << 20,           # > v5e's 16 MiB default, < v7x physical
        ),
        cost_estimate=pl.CostEstimate(
            flops=2 * rows * _LANES,
            transcendentals=0,
            bytes_accessed=2 * rows * _LANES * elem_bytes,
        ),
    )(params, x2d)

    y_main = y2d.reshape(n_main, OUT_DIM)
    if n_main == B:
        return y_main

    # Ragged tail (< 128 elements): plain fused XLA FMA, then stitch.
    x_tail = x_flat[n_main:]
    y_tail = (x_tail.astype(jnp.float32) * w_s + b_s).astype(x.dtype)
    return jnp.concatenate([y_main, y_tail.reshape(-1, OUT_DIM)], axis=0)


if __name__ == "__main__":
    key = jax.random.PRNGKey(0)
    kx, kw, kb, kx2 = jax.random.split(key, 4)

    # Deterministic init mimicking nn.Linear's uniform(-1/sqrt(in), 1/sqrt(in)).
    bound = 1.0 / (IN_DIM ** 0.5)
    w = jax.random.uniform(kw, (OUT_DIM, IN_DIM), dtype=jnp.float32,
                           minval=-bound, maxval=bound)
    b = jax.random.uniform(kb, (OUT_DIM,), dtype=jnp.float32,
                           minval=-bound, maxval=bound)

    # 1) Small, lane-aligned batch: zero-copy kernel path (fallback disabled so
    #    the Pallas kernel itself is exercised).
    batch = 256
    x = jax.random.normal(kx, (batch, IN_DIM), dtype=jnp.float32)
    y = jax.block_until_ready(classical_lr_forward(x, w, b, xla_fallback_below=0))
    y_ref = x @ w.T + b[None, :]
    assert y.shape == (batch, OUT_DIM)
    assert jnp.allclose(y, y_ref, atol=1e-6, rtol=1e-6)

    # 2) Ragged batch: multi-step parallel grid + masked partial row-block
    #    inside the kernel + tiny XLA tail.
    batch2 = 5000
    x2 = jax.random.normal(kx2, (batch2, IN_DIM), dtype=jnp.float32)
    y2 = jax.block_until_ready(classical_lr_forward(x2, w, b, xla_fallback_below=0))
    y2_ref = x2 @ w.T + b[None, :]
    assert y2.shape == (batch2, OUT_DIM)
    assert jnp.allclose(y2, y2_ref, atol=1e-6, rtol=1e-6)

    # 3) Default path: small batch takes the fused-XLA fallback (no dispatch).
    y3 = jax.block_until_ready(classical_lr_forward(x, w, b))
    assert jnp.allclose(y3, y_ref, atol=1e-6, rtol=1e-6)

    print("KERNEL_OK")
</pallas_src>

<mosaic_0001>
module attributes {stable_mosaic.version = 11 : i64} {
  func.func @_fma_kernel(%arg0: i32, %arg1: memref<2xf32, #tpu.memory_space<smem>>, %arg2: memref<8x128xf32, #tpu.memory_space<vmem>>, %arg3: memref<8x128xf32, #tpu.memory_space<vmem>>) attributes {dimension_semantics = [#tpu.dimension_semantics<parallel>], iteration_bounds = array<i64: 1>, scalar_prefetch = 0 : i64, scratch_operands = 0 : i64, tpu.core_type = #tpu.core_type<tc>, window_params = [{transform_indices = @transform_0, window_bounds = array<i64: 2>}, {transform_indices = @transform_1, window_bounds = array<i64: 8, 128>}, {transform_indices = @transform_2, window_bounds = array<i64: 8, 128>}]} {
    %c0 = arith.constant 0 : index
    %0 = memref.load %arg1[%c0] : memref<2xf32, #tpu.memory_space<smem>>
    %c1 = arith.constant 1 : index
    %1 = memref.load %arg1[%c1] : memref<2xf32, #tpu.memory_space<smem>>
    %c0_0 = arith.constant 0 : index
    %c0_1 = arith.constant 0 : index
    %2 = vector.load %arg2[%c0_0, %c0_1] : memref<8x128xf32, #tpu.memory_space<vmem>>, vector<8x128xf32>
    %3 = vector.broadcast %0 : f32 to vector<8x128xf32>
    %4 = arith.mulf %2, %3 : vector<8x128xf32>
    %5 = vector.broadcast %1 : f32 to vector<8x128xf32>
    %6 = arith.addf %4, %5 : vector<8x128xf32>
    %c0_2 = arith.constant 0 : index
    %c0_3 = arith.constant 0 : index
    %7 = vector.load %arg3[%c0_2, %c0_3] : memref<8x128xf32, #tpu.memory_space<vmem>>, vector<8x128xf32>
    tpu.vector_store %arg3[%c0_2, %c0_3], %6 {strides = array<i32>} : memref<8x128xf32, #tpu.memory_space<vmem>>, vector<8x128xf32>,
    return
  }
  func.func @transform_0(%arg0: i32) -> i32 {
    %c0_i32 = arith.constant 0 : i32
    %c0_i32_0 = arith.constant 0 : i32
    return %c0_i32 : i32
  }
  func.func @transform_1(%arg0: i32) -> (i32, i32) {
    %c0_i32 = arith.constant 0 : i32
    %c0_i32_0 = arith.constant 0 : i32
    return %arg0, %c0_i32 : i32, i32
  }
  func.func @transform_2(%arg0: i32) -> (i32, i32) {
    %c0_i32 = arith.constant 0 : i32
    %c0_i32_0 = arith.constant 0 : i32
    return %arg0, %c0_i32 : i32, i32
  }
}

</mosaic_0001>

<llo_original>
// kernel: tpu_custom_call.1
$region0: #{tpu_custom_call.1}
  #allocation0 [shape = 'u32[]', space=smem, size = 0x4, offset = 0x4, fixed_abs, tag = 'smem constant byte address 0x4 - core index']
  #allocation1 [shape = 'u32[144,128]{1,0:T(1,128)}', space=vmem, size = 0x12000, scoped, tag = 'internal scratch']
  %s0 = inlined_call_operand.hbm [shape: f32[2], index: 0, kind: input, shape index: {}]
  %s1 = inlined_call_operand.vmem [shape: f32[2,128], index: 1, kind: input, shape index: {}]
  %s2 = inlined_call_operand.hbm [shape: f32[2,128], index: 2, kind: output, shape index: {}]
  %s3 = sld [smem:[#allocation0]]
  $region22: #{tpu_custom_call.1} parent=0
    _
  %s5 = ssub.s32 1, %s3
  %s6 = scalar_select 0, %s5, %s3
  $region1: #{tpu_custom_call.1} parent=0
    #allocation2 [shape = 'u8[512]{0}', space=smem, size = 0x200, scoped, tag = 'input window, operand 0, single buffered']
    #allocation3 [shape = 's32[1]{0}', space=sflag, size = 0x4, scoped, tag = 'scoped memory for tpu_custom_call.1']
    #allocation4 [shape = 's32[1]{0}', space=sflag, size = 0x4, scoped, tag = 'scoped memory for tpu_custom_call.1']
    #allocation5 [shape = 'u8[4096]{0}', space=vmem, size = 0x1000, scoped, tag = 'output window, operand 0, single buffered']
    %7 = vsyncpa [#allocation4], 0
    %8 = vsyncpa [#allocation3], 0
    // Predicated region
    $region2: #{tpu_custom_call.1} parent=1 // pred_check
      _
    $region3: #{tpu_custom_call.1} parent=1 // pred_check_branch
      %10 = sbr.rel (0) target = $region5
    $region4: #{tpu_custom_call.1} parent=1 // pred_region
      %s12 = ssub.s32 16, 16
      %13 = vsyncadd [#allocation4], %s12
      %16 = dma.hbm_to_smem %s0, 16, [#allocation2], [#allocation4]
    $region5: #{tpu_custom_call.1} parent=1 // pred_fallthru
      _
    // Predicated region
    $region6: #{tpu_custom_call.1} parent=1 // pred_check
      _
    $region7: #{tpu_custom_call.1} parent=1 // pred_check_branch
      %18 = sbr.rel (0) target = $region9
    $region8: #{tpu_custom_call.1} parent=1 // pred_region
      _
    $region9: #{tpu_custom_call.1} parent=1 // pred_fallthru
      _
    // Predicated region
    $region10: #{tpu_custom_call.1} parent=1 // pred_check
      _
    $region11: #{tpu_custom_call.1} parent=1 // pred_check_branch
      %20 = sbr.rel (0) target = $region13
    $region12: #{tpu_custom_call.1} parent=1 // pred_region
      %21 = dma.done [#allocation4], 16
    $region13: #{tpu_custom_call.1} parent=1 // pred_fallthru
      _
    %22 = sfence
    %s23 = sld [smem:[#allocation2]]
    %s24 = sld [smem:[#allocation2 + $0x1]]
    %v25 = vld [vmem:[%s1] sm:$0xff]
    %v26 = vstv %s23
    %v27 = vmul.f32 %v25, %v26
    %v28 = vstv %s24
    %v29 = vadd.f32 %v27, %v28
    %30 = vst [vmem:[#allocation5] sm:$0xff] %v29
    // Predicated region
    $region14: #{tpu_custom_call.1} parent=1 // pred_check
      _
    $region15: #{tpu_custom_call.1} parent=1 // pred_check_branch
      %32 = sbr.rel (0) target = $region17
    $region16: #{tpu_custom_call.1} parent=1 // pred_region
      %s34 = ssub.s32 128, 32
      %35 = vsyncadd [#allocation3], %s34
      %s36 = sshll.u32 [#allocation5], 4
      %s37 = int_to_ptr.vmem [resolvable:$true] %s36
      %42 = dma.vmem_to_hbm [thread:$0]  %s37, 32, %s2, [#allocation3], 32, 32, 2
    $region17: #{tpu_custom_call.1} parent=1 // pred_fallthru
      _
    // Predicated region
    $region18: #{tpu_custom_call.1} parent=1 // pred_check
      _
    $region19: #{tpu_custom_call.1} parent=1 // pred_check_branch
      %44 = sbr.rel (0) target = $region21
    $region20: #{tpu_custom_call.1} parent=1 // pred_region
      %45 = dma.done [#allocation3], 128
    $region21: #{tpu_custom_call.1} parent=1 // pred_fallthru
      _
    %46 = vsyncpa [#allocation3], 1
    %47 = vsyncpa [#allocation4], 1

</llo_original>
